<compile_context>
chip_gen: v5e
topology: v5e:2x2
jax: 0.10.0
libtpu: 0.0.40
codegen_flags: <defaults>
</compile_context>

<pallas_src>
import jax
import jax.numpy as jnp
from jax import lax
from jax.experimental import pallas as pl
from jax.experimental.pallas import tpu as pltpu

HIDDEN_SIZE = 64
RNN_HIDDEN = HIDDEN_SIZE // 2  # 32


def _round_up(x, m):
    return ((x + m - 1) // m) * m


def _plan_axis(size, tile, align):
    """Pick (effective tile, padded size) for one tiled axis.

    If the whole axis fits in one tile, use a single full-extent block (no
    alignment requirement, no padding).  Otherwise round the tile up to the
    required alignment and pad the axis to a tile multiple.
    """
    if size <= tile:
        return size, size
    tile = _round_up(tile, align)
    return tile, _round_up(size, tile)


def bilinet_kernel(de_ref, en_ref, m2_ref, out_ref, p_ref):
    # de_ref : (bb, t_d, R)    decoder activations tile
    # en_ref : (bb, t_e, H)    encoder activations tile (natural layout)
    # m2_ref : (R, H)          fused weight  W2^T @ u1^T @ W1
    # out_ref: (bb, t_d, t_e)
    # p_ref  : (bb, t_d, H)    VMEM scratch holding de @ M2 for this (b, d) tile
    #
    # The S_e grid axis is innermost; the projection depends only on (b, d),
    # so compute it once per (b, d) tile and reuse it for every S_e tile.
    @pl.when(pl.program_id(2) == 0)
    def _():
        bb, t_d, r = de_ref.shape
        h = m2_ref.shape[1]
        de2 = de_ref[...].reshape(bb * t_d, r)          # fold (batch, seq) rows
        proj = jnp.dot(de2, m2_ref[...], preferred_element_type=jnp.float32)
        p_ref[...] = proj.reshape(bb, t_d, h)

    # Score: contract both operands on H ("bdh,beh->bde") -- no XLU transpose.
    out_ref[...] = lax.dot_general(
        p_ref[...], en_ref[...],
        dimension_numbers=(((2,), (2,)), ((0,), (0,))),
        preferred_element_type=jnp.float32).astype(out_ref.dtype)


def bilinet_forward(en, de, w1, w2, u1, *, batch_block=1, t_d=256, t_e=1024):
    """en: (B, S_e, H), de: (B, S_d, R), w1: (R, H), w2: (R, R), u1: (R, R)."""
    B, S_e, H = en.shape
    Bd, S_d, R = de.shape
    assert B == Bd and w1.shape == (R, H) and w2.shape == (R, R) and u1.shape == (R, R)

    bb = batch_block
    assert B % bb == 0, "batch_block must divide the batch size"

    # One-time fused weight chain (tiny); HIGHEST precision so the fused weight
    # is not silently truncated by low-precision MXU passes.
    m2 = jnp.dot(jnp.dot(w2.T, u1.T, precision=lax.Precision.HIGHEST), w1,
                 precision=lax.Precision.HIGHEST)                      # (R, H)

    # Tile plan.  S_d blocks need 8-alignment (sublane); S_e blocks need
    # 128-alignment (output lane dim) whenever the axis is actually tiled.
    t_d_eff, S_d_pad = _plan_axis(S_d, t_d, 8)
    t_e_eff, S_e_pad = _plan_axis(S_e, t_e, 128)

    de_p = de if S_d_pad == S_d else jnp.pad(de, ((0, 0), (0, S_d_pad - S_d), (0, 0)))
    en_p = en if S_e_pad == S_e else jnp.pad(en, ((0, 0), (0, S_e_pad - S_e), (0, 0)))

    n_b = B // bb
    n_d = S_d_pad // t_d_eff
    n_e = S_e_pad // t_e_eff

    # HBM traffic / flops hint for XLA's scheduler (en is re-read per S_d tile).
    flops = 2 * B * S_d_pad * R * H + 2 * B * S_d_pad * S_e_pad * H
    bytes_accessed = 4 * (de_p.size + en_p.size * n_d + m2.size
                          + B * S_d_pad * S_e_pad)

    # VMEM budget from the block math: double-buffered blocks + scratch, with
    # headroom.  At default tiles this is ~8 MiB -- safe on v5e/v6e/v7x.
    blk_bytes = 4 * (bb * t_d_eff * R + bb * t_e_eff * H + R * H
                     + bb * t_d_eff * t_e_eff)
    scratch_bytes = 4 * bb * t_d_eff * H
    vmem_limit = min(64 * 1024 * 1024,
                     max(8 * 1024 * 1024, 3 * blk_bytes + scratch_bytes))

    out = pl.pallas_call(
        bilinet_kernel,
        out_shape=jax.ShapeDtypeStruct((B, S_d_pad, S_e_pad), jnp.float32),
        grid_spec=pltpu.PrefetchScalarGridSpec(
            num_scalar_prefetch=0,
            # S_e innermost: the de block index is e-invariant, so its re-DMA
            # is skipped while the en/out streams pipeline across e.
            grid=(n_b, n_d, n_e),
            in_specs=[
                pl.BlockSpec((bb, t_d_eff, R), lambda b, d, e: (b, d, 0)),
                pl.BlockSpec((bb, t_e_eff, H), lambda b, d, e: (b, e, 0)),
                pl.BlockSpec((R, H), lambda b, d, e: (0, 0)),
            ],
            out_specs=pl.BlockSpec((bb, t_d_eff, t_e_eff),
                                   lambda b, d, e: (b, d, e)),
            scratch_shapes=[pltpu.VMEM((bb, t_d_eff, H), jnp.float32)],
        ),
        compiler_params=pltpu.CompilerParams(
            # S_e axis is "arbitrary": the projection scratch carries state
            # across it (initialized under pl.when(e == 0)).
            dimension_semantics=("parallel", "parallel", "arbitrary"),
            vmem_limit_bytes=vmem_limit),
        cost_estimate=pl.CostEstimate(
            flops=flops, transcendentals=0, bytes_accessed=bytes_accessed),
    )(de_p, en_p, m2)

    if S_d_pad != S_d or S_e_pad != S_e:
        out = out[:, :S_d, :S_e]
    return out


def _xavier_normal(key, shape):
    fan_in, fan_out = shape[1], shape[0]
    std = (2.0 / (fan_in + fan_out)) ** 0.5
    return std * jax.random.normal(key, shape, dtype=jnp.float32)


if __name__ == "__main__":
    key = jax.random.PRNGKey(0)
    k_en, k_de, k_w1, k_w2, k_u1 = jax.random.split(key, 5)

    B, S = 2, 8
    # Per the nn.Linear shapes: en has HIDDEN_SIZE features, de has RNN_HIDDEN.
    en = jax.random.normal(k_en, (B, S, HIDDEN_SIZE), dtype=jnp.float32)
    de = jax.random.normal(k_de, (B, S, RNN_HIDDEN), dtype=jnp.float32)

    # Deterministic parameter init (xavier-normal-like), matching torch shapes:
    w1 = _xavier_normal(k_w1, (RNN_HIDDEN, HIDDEN_SIZE))  # nnW1.weight
    w2 = _xavier_normal(k_w2, (RNN_HIDDEN, RNN_HIDDEN))   # nnW2.weight
    u1 = _xavier_normal(k_u1, (RNN_HIDDEN, RNN_HIDDEN))   # bilinear u1

    out = bilinet_forward(en, de, w1, w2, u1)
    jax.block_until_ready(out)

    # Pure-JAX reference of the PyTorch semantics.
    we = jnp.einsum("beh,rh->ber", en, w1)
    wd = jnp.einsum("bdr,qr->bdq", de, w2)
    att = jnp.einsum("ber,rq->beq", we, u1)
    ref = jnp.swapaxes(jnp.einsum("beq,bdq->bed", att, wd), 1, 2)
    assert out.shape == ref.shape
    assert jnp.allclose(out, ref, atol=1e-4, rtol=1e-4)

    print("KERNEL_OK")
</pallas_src>

<mosaic_0001>
module attributes {stable_mosaic.version = 11 : i64} {
  func.func @bilinet_kernel(%arg0: i32, %arg1: i32, %arg2: i32, %arg3: memref<1x8x32xf32, #tpu.memory_space<vmem>>, %arg4: memref<1x8x64xf32, #tpu.memory_space<vmem>>, %arg5: memref<32x64xf32, #tpu.memory_space<vmem>>, %arg6: memref<1x8x8xf32, #tpu.memory_space<vmem>>, %arg7: memref<1x8x64xf32, #tpu.memory_space<vmem>>) attributes {dimension_semantics = [#tpu.dimension_semantics<parallel>, #tpu.dimension_semantics<parallel>, #tpu.dimension_semantics<arbitrary>], iteration_bounds = array<i64: 2, 1, 1>, scalar_prefetch = 0 : i64, scratch_operands = 1 : i64, tpu.core_type = #tpu.core_type<tc>, window_params = [{transform_indices = @transform_0, window_bounds = array<i64: 1, 8, 32>}, {transform_indices = @transform_1, window_bounds = array<i64: 1, 8, 64>}, {pipeline_mode = #tpu.pipeline_mode<synchronous>, transform_indices = @transform_2, window_bounds = array<i64: 32, 64>}, {transform_indices = @transform_3, window_bounds = array<i64: 1, 8, 8>}]} {
    %c0_i32 = arith.constant 0 : i32
    %0 = arith.cmpi eq, %arg2, %c0_i32 : i32
    %1 = arith.extui %0 : i1 to i32
    %c0_i32_0 = arith.constant 0 : i32
    %2 = arith.cmpi ne, %1, %c0_i32_0 : i32
    scf.if %2 {
      %c0_9 = arith.constant 0 : index
      %c0_10 = arith.constant 0 : index
      %c0_11 = arith.constant 0 : index
      %7 = vector.load %arg3[%c0_9, %c0_10, %c0_11] : memref<1x8x32xf32, #tpu.memory_space<vmem>>, vector<1x8x32xf32>
      %8 = vector.shape_cast %7 : vector<1x8x32xf32> to vector<8x32xf32>
      %c0_12 = arith.constant 0 : index
      %c0_13 = arith.constant 0 : index
      %9 = vector.load %arg5[%c0_12, %c0_13] : memref<32x64xf32, #tpu.memory_space<vmem>>, vector<32x64xf32>
      %cst_14 = arith.constant dense<0.000000e+00> : vector<8x64xf32>
      %10 = tpu.matmul %8, %9, %cst_14 {dimension_numbers = #tpu.dot_dimension_numbers<[1], [0], [0], [1], [0, 0, 1, 1], [], []>} : vector<8x32xf32>, vector<32x64xf32>, vector<8x64xf32> -> vector<8x64xf32>
      %11 = vector.shape_cast %10 : vector<8x64xf32> to vector<1x8x64xf32>
      %c0_15 = arith.constant 0 : index
      %c0_16 = arith.constant 0 : index
      %c0_17 = arith.constant 0 : index
      %12 = vector.load %arg7[%c0_15, %c0_16, %c0_17] : memref<1x8x64xf32, #tpu.memory_space<vmem>>, vector<1x8x64xf32>
      tpu.vector_store %arg7[%c0_15, %c0_16, %c0_17], %11 {strides = array<i32>} : memref<1x8x64xf32, #tpu.memory_space<vmem>>, vector<1x8x64xf32>,
    } else {
    }
    %c0 = arith.constant 0 : index
    %c0_1 = arith.constant 0 : index
    %c0_2 = arith.constant 0 : index
    %3 = vector.load %arg7[%c0, %c0_1, %c0_2] : memref<1x8x64xf32, #tpu.memory_space<vmem>>, vector<1x8x64xf32>
    %c0_3 = arith.constant 0 : index
    %c0_4 = arith.constant 0 : index
    %c0_5 = arith.constant 0 : index
    %4 = vector.load %arg4[%c0_3, %c0_4, %c0_5] : memref<1x8x64xf32, #tpu.memory_space<vmem>>, vector<1x8x64xf32>
    %cst = arith.constant dense<0.000000e+00> : vector<1x8x8xf32>
    %5 = tpu.matmul %3, %4, %cst {dimension_numbers = #tpu.dot_dimension_numbers<[2], [2], [1], [1], [0, 0, 0, 1, 1, 1], [0], [0]>} : vector<1x8x64xf32>, vector<1x8x64xf32>, vector<1x8x8xf32> -> vector<1x8x8xf32>
    %c0_6 = arith.constant 0 : index
    %c0_7 = arith.constant 0 : index
    %c0_8 = arith.constant 0 : index
    %6 = vector.load %arg6[%c0_6, %c0_7, %c0_8] : memref<1x8x8xf32, #tpu.memory_space<vmem>>, vector<1x8x8xf32>
    tpu.vector_store %arg6[%c0_6, %c0_7, %c0_8], %5 {strides = array<i32>} : memref<1x8x8xf32, #tpu.memory_space<vmem>>, vector<1x8x8xf32>,
    return
  }
  func.func @transform_0(%arg0: i32, %arg1: i32, %arg2: i32) -> (i32, i32, i32) {
    %c0_i32 = arith.constant 0 : i32
    %c0_i32_0 = arith.constant 0 : i32
    return %arg0, %arg1, %c0_i32 : i32, i32, i32
  }
  func.func @transform_1(%arg0: i32, %arg1: i32, %arg2: i32) -> (i32, i32, i32) {
    %c0_i32 = arith.constant 0 : i32
    %c0_i32_0 = arith.constant 0 : i32
    return %arg0, %arg2, %c0_i32 : i32, i32, i32
  }
  func.func @transform_2(%arg0: i32, %arg1: i32, %arg2: i32) -> (i32, i32) {
    %c0_i32 = arith.constant 0 : i32
    %c0_i32_0 = arith.constant 0 : i32
    %c0_i32_1 = arith.constant 0 : i32
    return %c0_i32, %c0_i32_0 : i32, i32
  }
  func.func @transform_3(%arg0: i32, %arg1: i32, %arg2: i32) -> (i32, i32, i32) {
    %c0_i32 = arith.constant 0 : i32
    return %arg0, %arg1, %arg2 : i32, i32, i32
  }
}

</mosaic_0001>

<llo_original>
// kernel: tpu_custom_call.1
$region0: #{tpu_custom_call.1}
  #allocation0 [shape = 'u32[]', space=smem, size = 0x4, offset = 0x4, fixed_abs, tag = 'smem constant byte address 0x4 - core index']
  #allocation1 [shape = 'u32[72,128]{1,0:T(1,128)}', space=vmem, size = 0x9000, scoped, tag = 'internal scratch']
  #allocation2 [shape = 'f32[1,8,64]{2,1,0:T(8,128)}', space=vmem, size = 0x1000, scoped, tag = 'scratch operand']
  %s0 = inlined_call_operand.hbm [shape: f32[2,8,32], index: 0, kind: input, shape index: {}]
  %s1 = inlined_call_operand.hbm [shape: f32[2,8,64], index: 1, kind: input, shape index: {}]
  %s2 = inlined_call_operand.hbm [shape: f32[32,64], index: 2, kind: input, shape index: {}]
  %s3 = inlined_call_operand.hbm [shape: f32[2,8,8], index: 3, kind: output, shape index: {}]
  %s4 = sld [smem:[#allocation0]]
  $region61: #{tpu_custom_call.1} parent=0
    _
  %s6 = ssub.s32 1, %s4
  %s7 = scalar_select 0, %s6, %s4
  $region1: #{tpu_custom_call.1} parent=0
    #allocation3 [shape = 'u8[8192]{0}', space=vmem, size = 0x2000, scoped, tag = 'input window, operand 0']
    #allocation4 [shape = 's32[2]{0}', space=sflag, size = 0x8, scoped, tag = 'scoped memory for tpu_custom_call.1']
    #allocation5 [shape = 's32[2]{0}', space=sflag, size = 0x8, scoped, tag = 'scoped memory for tpu_custom_call.1']
    #allocation6 [shape = 'u8[8192]{0}', space=vmem, size = 0x2000, scoped, tag = 'input window, operand 1']
    #allocation7 [shape = 's32[2]{0}', space=sflag, size = 0x8, scoped, tag = 'scoped memory for tpu_custom_call.1']
    #allocation8 [shape = 'u8[16384]{0}', space=vmem, size = 0x4000, scoped, tag = 'input window, operand 2, single buffered']
    #allocation9 [shape = 'u8[8192]{0}', space=vmem, size = 0x2000, scoped, tag = 'output window, operand 0']
    %8 = vsyncpa [#allocation4], 0
    %s9 = scalar_lea.sflag [#allocation4], 1
    %10 = vsyncpa %s9, 0
    %11 = vsyncpa [#allocation7], 0
    %s12 = scalar_lea.sflag [#allocation7], 1
    %13 = vsyncpa %s12, 0
    %14 = vsyncpa [#allocation5], 0
    %s15 = scalar_lea.sflag [#allocation5], 1
    %16 = vsyncpa %s15, 0
    loop: start=0, step=1, limit=4
    $region2: #{tpu_custom_call.1} parent=1 // loop_pre_header
      _
    $region3: #{tpu_custom_call.1} parent=1 // loop_header
      %s18 = sphi 0, %s22
      %p19 = scmp.ge.s32.totalorder %s18, 4
      %s25 = sphi 0, %s44
      %s26 = sphi 0, %s40
      %s27 = sphi 0, %s36
      %s28 = sphi 0, %s25
      %s29 = sphi 0, %s26
      %s30 = sphi 0, %s27
      %s31 = sphi 0, %s28
      %s32 = sphi 0, %s29
      %s33 = sphi 0, %s30
      %s49 = sphi 0, %s51
      %s52 = sphi 0, %s49
      %s53 = sphi 0, %s52
      %s69 = sphi 0, %s53
      %s77 = sphi 0, %s79
      %s80 = sphi 0, %s77
      %s81 = sphi 0, %s80
      %s97 = sphi 0, %s81
      %s101 = sphi 0, %s101
      %s103 = sphi 0, %s101
      %s104 = sphi 0, %s103
      %s118 = sphi 0, %s104
      %s128 = sphi 0, %s130
      %s131 = sphi 0, %s128
      %s132 = sphi 0, %s131
      %s148 = sphi 0, %s132
    $region4: #{tpu_custom_call.1} parent=1 // loop_header_branch
      %21 = sbr.rel (%p19) target = $region8
    $region5: #{tpu_custom_call.1} parent=1 // loop_body
      %s23 = ssub.s32 %s18, 1
      %s24 = ssub.s32 %s18, 2
      %s34 = sadd.s32 1, %s27
      %p35 = scmp.ge.s32.totalorder %s34, 1
      %s36 = scalar_select %p35, 0, %s34
      %s37 = sadd.s32 1, %s26
      %s38 = scalar_select %p35, %s37, %s26
      %p39 = scmp.ge.s32.totalorder %s38, 1
      %s40 = scalar_select %p39, 0, %s38
      %s41 = sadd.s32 1, %s25
      %s42 = scalar_select %p39, %s41, %s25
      %p43 = scmp.ge.s32.totalorder %s42, 2
      %s44 = scalar_select %p43, 0, %s42
      %s45 = ssub.s32 %s25, %s44
      %s46 = ssub.s32 %s26, %s40
      %s47 = sor.u32 %s45, %s46
      %p48 = scmp.eq.s32.totalorder %s47, 0
      %s50 = sadd.s32 %s49, 1
      %s51 = scalar_select %p48, %s49, %s50
      %p54 = pneg %p48
      %p55 = scmp.eq.s32.totalorder %s18, 1
      %p56 = por %p54, %p55
      %p57 = scmp.ne.s32.totalorder %s49, %s52
      %p58 = scmp.eq.s32.totalorder %s18, 0
      %p59 = por %p57, %p58
      %p60 = scmp.ne.s32.totalorder %s49, %s52
      %p61 = scmp.eq.s32.totalorder %s23, 1
      %p62 = por %p60, %p61
      %p63 = scmp.ne.s32.totalorder %s52, %s53
      %p64 = scmp.eq.s32.totalorder %s23, 0
      %p65 = por %p63, %p64
      %p66 = scmp.ne.s32.totalorder %s52, %s53
      %p67 = scmp.eq.s32.totalorder %s24, 1
      %p68 = por %p66, %p67
      %p70 = scmp.ne.s32.totalorder %s53, %s69
      %p71 = scmp.eq.s32.totalorder %s24, 0
      %p72 = por %p70, %p71
      %s73 = ssub.s32 %s25, %s44
      %s74 = ssub.s32 %s27, %s36
      %s75 = sor.u32 %s73, %s74
      %p76 = scmp.eq.s32.totalorder %s75, 0
      %s78 = sadd.s32 %s77, 1
      %s79 = scalar_select %p76, %s77, %s78
      %p82 = pneg %p76
      %p83 = scmp.eq.s32.totalorder %s18, 1
      %p84 = por %p82, %p83
      %p85 = scmp.ne.s32.totalorder %s77, %s80
      %p86 = scmp.eq.s32.totalorder %s18, 0
      %p87 = por %p85, %p86
      %p88 = scmp.ne.s32.totalorder %s77, %s80
      %p89 = scmp.eq.s32.totalorder %s23, 1
      %p90 = por %p88, %p89
      %p91 = scmp.ne.s32.totalorder %s80, %s81
      %p92 = scmp.eq.s32.totalorder %s23, 0
      %p93 = por %p91, %p92
      %p94 = scmp.ne.s32.totalorder %s80, %s81
      %p95 = scmp.eq.s32.totalorder %s24, 1
      %p96 = por %p94, %p95
      %p98 = scmp.ne.s32.totalorder %s81, %s97
      %p99 = scmp.eq.s32.totalorder %s24, 0
      %p100 = por %p98, %p99
      %s102 = sadd.s32 %s101, 1
      %p105 = scmp.eq.s32.totalorder %s18, 1
      %p106 = scmp.ne.s32.totalorder %s101, %s103
      %p107 = scmp.eq.s32.totalorder %s18, 0
      %p108 = por %p106, %p107
      %p109 = scmp.ne.s32.totalorder %s101, %s103
      %p110 = scmp.eq.s32.totalorder %s23, 1
      %p111 = por %p109, %p110
      %p112 = scmp.ne.s32.totalorder %s103, %s104
      %p113 = scmp.eq.s32.totalorder %s23, 0
      %p114 = por %p112, %p113
      %p115 = scmp.ne.s32.totalorder %s103, %s104
      %p116 = scmp.eq.s32.totalorder %s24, 1
      %p117 = por %p115, %p116
      %p119 = scmp.ne.s32.totalorder %s104, %s118
      %p120 = scmp.eq.s32.totalorder %s24, 0
      %p121 = por %p119, %p120
      %s122 = ssub.s32 %s25, %s44
      %s123 = ssub.s32 %s26, %s40
      %s124 = sor.u32 %s122, %s123
      %s125 = ssub.s32 %s27, %s36
      %s126 = sor.u32 %s124, %s125
      %p127 = scmp.eq.s32.totalorder %s126, 0
      %s129 = sadd.s32 %s128, 1
      %s130 = scalar_select %p127, %s128, %s129
      %p133 = pneg %p127
      %p134 = scmp.eq.s32.totalorder %s18, 1
      %p135 = por %p133, %p134
      %p136 = scmp.ne.s32.totalorder %s128, %s131
      %p137 = scmp.eq.s32.totalorder %s18, 0
      %p138 = por %p136, %p137
      %p139 = scmp.ne.s32.totalorder %s128, %s131
      %p140 = scmp.eq.s32.totalorder %s23, 1
      %p141 = por %p139, %p140
      %p142 = scmp.ne.s32.totalorder %s131, %s132
      %p143 = scmp.eq.s32.totalorder %s23, 0
      %p144 = por %p142, %p143
      %p145 = scmp.ne.s32.totalorder %s131, %s132
      %p146 = scmp.eq.s32.totalorder %s24, 1
      %p147 = por %p145, %p146
      %p149 = scmp.ne.s32.totalorder %s132, %s148
      %p150 = scmp.eq.s32.totalorder %s24, 0
      %p151 = por %p149, %p150
      %p152 = scmp.le.s32.totalorder 1, %s18
      %p153 = scmp.lt.s32.totalorder %s18, 3
      %p154 = pnand %p152, %p153
      %p155 = pneg %p154
      // Predicated region
      $region9: #{tpu_custom_call.1} parent=5 // pred_check
        _
      $region10: #{tpu_custom_call.1} parent=5 // pred_check_branch
        %157 = sbr.rel (%p154) target = $region12
      $region11: #{tpu_custom_call.1} parent=5 // pred_region
        %s158 = ssub.s32 %s18, 1
        // Predicated region
        $region13: #{tpu_custom_call.1} parent=11 // pred_check
          %p159 = pneg %p114
        $region14: #{tpu_custom_call.1} parent=11 // pred_check_branch
          %161 = sbr.rel (%p159) target = $region16
        $region15: #{tpu_custom_call.1} parent=11 // pred_region
          %163 = vsyncadd [#allocation7], 0
          %s164 = sshll.u32 %s2, 4
          %s165 = int_to_ptr.hbm [resolvable:$true] %s164
          %s166 = sshll.u32 [#allocation8], 4
          %s167 = int_to_ptr.vmem [resolvable:$true] %s166
          %172 = dma.hbm_to_vmem [thread:$0]  %s165, 512, %s167, [#allocation7], 128, 128, 8
        $region16: #{tpu_custom_call.1} parent=11 // pred_fallthru
          _
      $region12: #{tpu_custom_call.1} parent=5 // pred_fallthru
        _
      %p173 = scmp.lt.s32.totalorder %s18, 2
      // Predicated region
      $region17: #{tpu_custom_call.1} parent=5 // pred_check
        %p174 = pneg %p173
      $region18: #{tpu_custom_call.1} parent=5 // pred_check_branch
        %176 = sbr.rel (%p174) target = $region20
      $region19: #{tpu_custom_call.1} parent=5 // pred_region
        // Predicated region
        $region21: #{tpu_custom_call.1} parent=19 // pred_check
          %p177 = pneg %p59
        $region22: #{tpu_custom_call.1} parent=19 // pred_check_branch
          %179 = sbr.rel (%p177) target = $region24
        $region23: #{tpu_custom_call.1} parent=19 // pred_region
          %s180 = sand.u32 %s49, 1
          %s181 = scalar_lea.sflag [#allocation4], %s180
          %s182 = sand.u32 %s49, 1
          %s183 = smul.addr %s182, 8
          %s184 = scalar_lea.vmem [#allocation3], %s183
          %186 = vsyncadd %s181, 0
          %s187 = sadd.s32 %s26, %s25
          %s188 = smul.addr %s187, 8
          %s189 = scalar_lea.hbm %s0, %s188
          %s191 = sshll.u32 %s189, 4
          %s192 = int_to_ptr.hbm [resolvable:$true] %s191
          %s193 = sshll.u32 %s184, 4
          %s194 = int_to_ptr.vmem [resolvable:$true] %s193
          %196 = dma.hbm_to_vmem [thread:$0]  %s192, 128, %s194, %s181
        $region24: #{tpu_custom_call.1} parent=19 // pred_fallthru
          _
        // Predicated region
        $region25: #{tpu_custom_call.1} parent=19 // pred_check
          %p197 = pneg %p87
        $region26: #{tpu_custom_call.1} parent=19 // pred_check_branch
          %199 = sbr.rel (%p197) target = $region28
        $region27: #{tpu_custom_call.1} parent=19 // pred_region
          %s200 = sand.u32 %s18, 1
          %s201 = scalar_lea.sflag [#allocation7], %s200
          %s202 = sand.u32 %s77, 1
          %s203 = smul.addr %s202, 8
          %s204 = scalar_lea.vmem [#allocation6], %s203
          %206 = vsyncadd %s201, 0
          %s207 = sadd.s32 %s27, %s25
          %s208 = smul.addr %s207, 8
          %s209 = scalar_lea.hbm %s1, %s208
          %s211 = sshll.u32 %s209, 4
          %s212 = int_to_ptr.hbm [resolvable:$true] %s211
          %s213 = sshll.u32 %s204, 4
          %s214 = int_to_ptr.vmem [resolvable:$true] %s213
          %216 = dma.hbm_to_vmem [thread:$0]  %s212, 128, %s214, %s201
        $region28: #{tpu_custom_call.1} parent=19 // pred_fallthru
          _
      $region20: #{tpu_custom_call.1} parent=5 // pred_fallthru
        _
      %p217 = scmp.le.s32.totalorder 1, %s18
      %p218 = scmp.lt.s32.totalorder %s18, 3
      %p219 = pnand %p217, %p218
      %p220 = pneg %p219
      // Predicated region
      $region29: #{tpu_custom_call.1} parent=5 // pred_check
        _
      $region30: #{tpu_custom_call.1} parent=5 // pred_check_branch
        %222 = sbr.rel (%p219) target = $region32
      $region31: #{tpu_custom_call.1} parent=5 // pred_region
        %s223 = ssub.s32 %s18, 1
        %s224 = sand.u32 %s52, 1
        %s225 = scalar_lea.sflag [#allocation4], %s224
        %s226 = sand.u32 %s52, 1
        %s227 = smul.addr %s226, 8
        %s228 = scalar_lea.vmem [#allocation3], %s227
        // Predicated region
        $region33: #{tpu_custom_call.1} parent=31 // pred_check
          %p229 = pneg %p65
        $region34: #{tpu_custom_call.1} parent=31 // pred_check_branch
          %231 = sbr.rel (%p229) target = $region36
        $region35: #{tpu_custom_call.1} parent=31 // pred_region
          %233 = dma.done %s225, 128
        $region36: #{tpu_custom_call.1} parent=31 // pred_fallthru
          _
        %s234 = sand.u32 %s23, 1
        %s235 = scalar_lea.sflag [#allocation7], %s234
        %s236 = sand.u32 %s80, 1
        %s237 = smul.addr %s236, 8
        %s238 = scalar_lea.vmem [#allocation6], %s237
        // Predicated region
        $region37: #{tpu_custom_call.1} parent=31 // pred_check
          %p239 = pneg %p93
        $region38: #{tpu_custom_call.1} parent=31 // pred_check_branch
          %241 = sbr.rel (%p239) target = $region40
        $region39: #{tpu_custom_call.1} parent=31 // pred_region
          %243 = dma.done %s235, 128
        $region40: #{tpu_custom_call.1} parent=31 // pred_fallthru
          _
        // Predicated region
        $region41: #{tpu_custom_call.1} parent=31 // pred_check
          %p244 = pneg %p114
        $region42: #{tpu_custom_call.1} parent=31 // pred_check_branch
          %246 = sbr.rel (%p244) target = $region44
        $region43: #{tpu_custom_call.1} parent=31 // pred_region
          %248 = dma.done [#allocation7], 512
        $region44: #{tpu_custom_call.1} parent=31 // pred_fallthru
          _
        %s249 = sand.u32 %s52, 1
        %s250 = scalar_lea.sflag [#allocation4], %s249
        %s251 = sand.u32 %s52, 1
        %s252 = smul.addr %s251, 8
        %s253 = scalar_lea.vmem [#allocation3], %s252
        %p254 = pneg %p65
        %p255 = pneg %p62
        %s256 = sand.u32 %s23, 1
        %s257 = scalar_lea.sflag [#allocation7], %s256
        %s258 = sand.u32 %s80, 1
        %s259 = smul.addr %s258, 8
        %s260 = scalar_lea.vmem [#allocation6], %s259
        %p261 = pneg %p93
        %p262 = pneg %p90
        %p263 = pneg %p114
        %p264 = pneg %p111
        %p265 = pneg %p144
        %p266 = pneg %p141
        %s267 = sand.u32 %s131, 1
        %s268 = scalar_lea.sflag [#allocation5], %s267
        %s269 = sand.u32 %s131, 1
        %s270 = smul.addr %s269, 8
        %s271 = scalar_lea.vmem [#allocation9], %s270
        %p272 = scmp.eq.s32.totalorder %s30, 0
        // Predicated region
        $region45: #{tpu_custom_call.1} parent=31 // pred_check
          %p273 = pneg %p272
        $region46: #{tpu_custom_call.1} parent=31 // pred_check_branch
          %275 = sbr.rel (%p273) target = $region48
        $region47: #{tpu_custom_call.1} parent=31 // pred_region
          %v276 = vld [vmem:[%s228] sm:$0xff]
          %v277 = vld [vmem:[#allocation8] sm:$0xff]
          %v278 = vld [vmem:[#allocation8 + $0x8] sm:$0xff]
          %v279 = vld [vmem:[#allocation8 + $0x10] sm:$0xff]
          %v280 = vld [vmem:[#allocation8 + $0x18] sm:$0xff]
          %vm281 = vcmask 261120
          %v283 = vsel %vm281, %v276, 0
          %285 = vmatpush.msra.mxu0 0.0
          %286 = vmatpush.msra.mxu0 0.0
          %287 = vmatpush.msra.mxu0 0.0
          %288 = vmatpush.msra.mxu0 0.0
          %289 = vmatpush.msra.mxu0 0.0
          %290 = vmatpush.msra.mxu0 0.0
          %291 = vmatpush.msra.mxu0 0.0
          %292 = vmatpush.msra.mxu0 0.0
          %293 = vmatpush.msra.mxu0 0.0
          %294 = vmatpush.msra.mxu0 0.0
          %295 = vmatpush.msra.mxu0 0.0
          %296 = vmatpush.msra.mxu0 0.0
          %297 = vmatpush.msra.mxu0 %v280
          %298 = vmatpush.msra.mxu0 %v279
          %299 = vmatpush.msra.mxu0 %v278
          %300 = vmatpush.msra.mxu0 %v277
          %301 = vmatmul.f32.gmra.mxu0 %v283
          %v302 = vpop.f32.mrf.mxu0
          %v303 = vadd.f32 0.0, %v302
          %304 = vdwg.mxu0
          %vm305 = vcmask 523264
          %306 = vst.msk [vmem:[#allocation2] sm:$0xff] %vm305, %v303
        $region48: #{tpu_custom_call.1} parent=31 // pred_fallthru
          _
        %v307 = vld [vmem:[#allocation2] sm:$0xff]
        %v308 = vld [vmem:[%s238] sm:$0xff]
        %vm309 = vcmask 523264
        %v311 = vsel %vm309, %v307, 0
        %v314 = vsel %vm309, %v308, 0
        %316 = vmatpush.xpose.msra.mxu0 0.0
        %317 = vmatpush.xpose.msra.mxu0 0.0
        %318 = vmatpush.xpose.msra.mxu0 0.0
        %319 = vmatpush.xpose.msra.mxu0 0.0
        %320 = vmatpush.xpose.msra.mxu0 0.0
        %321 = vmatpush.xpose.msra.mxu0 0.0
        %322 = vmatpush.xpose.msra.mxu0 0.0
        %323 = vmatpush.xpose.msra.mxu0 0.0
        %324 = vmatpush.xpose.msra.mxu0 0.0
        %325 = vmatpush.xpose.msra.mxu0 0.0
        %326 = vmatpush.xpose.msra.mxu0 0.0
        %327 = vmatpush.xpose.msra.mxu0 0.0
        %328 = vmatpush.xpose.msra.mxu0 0.0
        %329 = vmatpush.xpose.msra.mxu0 0.0
        %330 = vmatpush.xpose.msra.mxu0 0.0
        %331 = vmatpush.xpose.msra.mxu0 %v314
        %332 = vmatmul.f32.gmra.mxu0 %v311
        %v333 = vpop.f32.mrf.mxu0
        %v334 = vadd.f32 0.0, %v333
        %335 = vdwg.mxu0
        %vm336 = vcmask 64512
        %337 = vst.msk [vmem:[%s271] sm:$0xff] %vm336, %v334
        %s338 = sand.u32 %s131, 1
        %s339 = scalar_lea.sflag [#allocation5], %s338
        %s340 = sand.u32 %s131, 1
        %s341 = smul.addr %s340, 8
        %s342 = scalar_lea.vmem [#allocation9], %s341
        // Predicated region
        $region49: #{tpu_custom_call.1} parent=31 // pred_check
          %p343 = pneg %p141
        $region50: #{tpu_custom_call.1} parent=31 // pred_check_branch
          %345 = sbr.rel (%p343) target = $region52
        $region51: #{tpu_custom_call.1} parent=31 // pred_region
          %347 = vsyncadd %s339, 0
          %s348 = sadd.s32 %s30, %s29
          %s349 = sadd.s32 %s348, %s28
          %s350 = smul.addr %s349, 8
          %s351 = scalar_lea.hbm %s3, %s350
          %s353 = sshll.u32 %s342, 4
          %s354 = int_to_ptr.vmem [resolvable:$true] %s353
          %s355 = sshll.u32 %s351, 4
          %s356 = int_to_ptr.hbm [resolvable:$true] %s355
          %358 = dma.vmem_to_hbm [thread:$0]  %s354, 128, %s356, %s339
        $region52: #{tpu_custom_call.1} parent=31 // pred_fallthru
          _
      $region32: #{tpu_custom_call.1} parent=5 // pred_fallthru
        _
      %p359 = scmp.le.s32.totalorder 2, %s18
      // Predicated region
      $region53: #{tpu_custom_call.1} parent=5 // pred_check
        %p360 = pneg %p359
      $region54: #{tpu_custom_call.1} parent=5 // pred_check_branch
        %362 = sbr.rel (%p360) target = $region56
      $region55: #{tpu_custom_call.1} parent=5 // pred_region
        %s363 = ssub.s32 %s18, 2
        // Predicated region
        $region57: #{tpu_custom_call.1} parent=55 // pred_check
          %p364 = pneg %p147
        $region58: #{tpu_custom_call.1} parent=55 // pred_check_branch
          %366 = sbr.rel (%p364) target = $region60
        $region59: #{tpu_custom_call.1} parent=55 // pred_region
          %s367 = sand.u32 %s132, 1
          %s368 = scalar_lea.sflag [#allocation5], %s367
          %s369 = sand.u32 %s132, 1
          %s370 = smul.addr %s369, 8
          %s371 = scalar_lea.vmem [#allocation9], %s370
          %373 = dma.done %s368, 128
        $region60: #{tpu_custom_call.1} parent=55 // pred_fallthru
          _
      $region56: #{tpu_custom_call.1} parent=5 // pred_fallthru
        _
    $region6: #{tpu_custom_call.1} parent=1 // loop_footer
      %s22 = sadd.s32 1, %s18
    $region7: #{tpu_custom_call.1} parent=1 // loop_footer_branch
      %17 = sbr.rel target = $region3
    $region8: #{tpu_custom_call.1} parent=1 // loop_exit
      _
    %374 = vsyncpa [#allocation4], 1
    %s375 = scalar_lea.sflag [#allocation4], 1
    %376 = vsyncpa %s375, 1
    %377 = vsyncpa [#allocation7], 1
    %s378 = scalar_lea.sflag [#allocation7], 1
    %379 = vsyncpa %s378, 1
    %380 = vsyncpa [#allocation5], 1
    %s381 = scalar_lea.sflag [#allocation5], 1
    %382 = vsyncpa %s381, 1

</llo_original>
